<compile_context>
chip_gen: v6e
topology: v6e:2x2x1
jax: 0.10.0
libtpu: 0.0.40
codegen_flags: <defaults>
</compile_context>

<pallas_src>
import functools

import jax
import jax.numpy as jnp
from jax.experimental import pallas as pl
from jax.experimental.pallas import tpu as pltpu


def annlfs_kernel(w_ref, b_ref, xt_ref, o_ref, *, in_features):
    # w_ref:  SMEM (in_features,)  -- linear weight row
    # b_ref:  SMEM (1,)            -- bias
    # xt_ref: VMEM (in_features, TB)  -- inputs, batch on the lane axis
    # o_ref:  VMEM (1, TB)            -- outputs, batch on the lane axis
    xt = xt_ref[...].astype(jnp.float32)          # (IN, TB)
    tb = xt.shape[1]
    acc = jnp.full((1, tb), b_ref[0], dtype=jnp.float32)
    # in_features is tiny (2) -> fully unrolled scalar*vector FMAs on the VPU.
    for k in range(in_features):
        acc = acc + w_ref[k] * xt[k:k + 1, :]
    o_ref[...] = jnp.maximum(acc, 0.0).astype(o_ref.dtype)


def annlfs_forward(x, weight, bias, *, tb=1024):
    """Pallas implementation of ANNLFS.forward: relu(Linear(x)).

    x:      (B, in_features) float32
    weight: (1, in_features) float32   (nn.Linear weight)
    bias:   (1,)             float32   (nn.Linear bias)
    returns (B, 1) float32
    """
    B, in_features = x.shape

    # Batch tile: multiple of 128 lanes; cap at `tb` for large batches.
    if B >= tb:
        TB = tb
    else:
        TB = max(128, 128 * pl.cdiv(B, 128))
    num_tiles = pl.cdiv(B, TB)
    B_pad = num_tiles * TB

    # Transpose once in the wrapper so batch sits on the lane axis; pad the
    # batch to a whole number of tiles (padded columns are sliced off below).
    xt = x.T                                           # (in_features, B)
    if B_pad != B:
        xt = jnp.pad(xt, ((0, 0), (0, B_pad - B)))     # (in_features, B_pad)

    w = weight.reshape(-1).astype(jnp.float32)         # (in_features,)
    b = bias.reshape(-1).astype(jnp.float32)           # (1,)

    kernel = functools.partial(annlfs_kernel, in_features=in_features)

    out = pl.pallas_call(
        kernel,
        out_shape=jax.ShapeDtypeStruct((1, B_pad), x.dtype),
        grid=(num_tiles,),
        in_specs=[
            # Grid-invariant scalars -> SMEM, read with scalar indexing.
            pl.BlockSpec(memory_space=pltpu.MemorySpace.SMEM),   # weight
            pl.BlockSpec(memory_space=pltpu.MemorySpace.SMEM),   # bias
            # Lane-dense input tile: (in_features, TB), batch on lanes.
            pl.BlockSpec((in_features, TB), lambda i: (0, i)),
        ],
        # Lane-dense output tile: (1, TB).
        out_specs=pl.BlockSpec((1, TB), lambda i: (0, i)),
        compiler_params=pltpu.CompilerParams(
            dimension_semantics=("parallel",),
            vmem_limit_bytes=32 * 1024 * 1024,  # tiny footprint; safe on v5e/v6e/v7x
        ),
    )(w, b, xt)

    # Back to the PyTorch layout (B, 1); drop padded batch columns.
    return out[0, :B].reshape(B, 1)


if __name__ == "__main__":
    key = jax.random.PRNGKey(0)
    kx, kw, kb, kx2 = jax.random.split(key, 4)

    batch = 8
    in_size = 2  # (hourly linear trend, temperature) as in the module docstring

    # Example input: column 0 = hour index, column 1 = temperature-like value
    x = jax.random.uniform(kx, (batch, in_size), dtype=jnp.float32) * 10.0

    # Deterministic parameter init (nn.Linear-style uniform in [-1/sqrt(in), 1/sqrt(in)])
    bound = 1.0 / jnp.sqrt(jnp.float32(in_size))
    weight = jax.random.uniform(
        kw, (1, in_size), dtype=jnp.float32, minval=-bound, maxval=bound
    )
    bias = jax.random.uniform(
        kb, (1,), dtype=jnp.float32, minval=-bound, maxval=bound
    )

    out = annlfs_forward(x, weight, bias)
    out = jax.block_until_ready(out)

    ref = jnp.maximum(x @ weight.T + bias, 0.0)
    assert out.shape == (batch, 1)
    assert jnp.allclose(out, ref, atol=1e-5, rtol=1e-5)

    # Second check: batch not a multiple of the tile / 128 -> exercises multi-tile
    # grid and the padded-last-tile slicing path.
    batch2 = 1300
    x2 = jax.random.uniform(kx2, (batch2, in_size), dtype=jnp.float32) * 10.0
    out2 = jax.block_until_ready(annlfs_forward(x2, weight, bias))
    ref2 = jnp.maximum(x2 @ weight.T + bias, 0.0)
    assert out2.shape == (batch2, 1)
    assert jnp.allclose(out2, ref2, atol=1e-5, rtol=1e-5)

    print("KERNEL_OK")
</pallas_src>

<mosaic_0001>
module attributes {stable_mosaic.version = 11 : i64} {
  func.func @annlfs_kernel(%arg0: i32, %arg1: memref<2xf32, #tpu.memory_space<smem>>, %arg2: memref<1xf32, #tpu.memory_space<smem>>, %arg3: memref<2x128xf32, #tpu.memory_space<vmem>>, %arg4: memref<1x128xf32, #tpu.memory_space<vmem>>) attributes {dimension_semantics = [#tpu.dimension_semantics<parallel>], iteration_bounds = array<i64: 1>, scalar_prefetch = 0 : i64, scratch_operands = 0 : i64, tpu.core_type = #tpu.core_type<tc>, window_params = [{transform_indices = @transform_0, window_bounds = array<i64: 2>}, {transform_indices = @transform_1, window_bounds = array<i64: 1>}, {transform_indices = @transform_2, window_bounds = array<i64: 2, 128>}, {transform_indices = @transform_3, window_bounds = array<i64: 1, 128>}]} {
    %c0 = arith.constant 0 : index
    %c0_0 = arith.constant 0 : index
    %0 = vector.load %arg3[%c0, %c0_0] : memref<2x128xf32, #tpu.memory_space<vmem>>, vector<2x128xf32>
    %c0_1 = arith.constant 0 : index
    %1 = memref.load %arg2[%c0_1] : memref<1xf32, #tpu.memory_space<smem>>
    %2 = vector.broadcast %1 : f32 to vector<1x128xf32>
    %c0_2 = arith.constant 0 : index
    %3 = memref.load %arg1[%c0_2] : memref<2xf32, #tpu.memory_space<smem>>
    %4 = vector.extract_strided_slice %0 {offsets = [0, 0], sizes = [1, 128], strides = [1, 1]} : vector<2x128xf32> to vector<1x128xf32>
    %5 = vector.broadcast %3 : f32 to vector<1x128xf32>
    %6 = arith.mulf %5, %4 : vector<1x128xf32>
    %7 = arith.addf %2, %6 : vector<1x128xf32>
    %c1 = arith.constant 1 : index
    %8 = memref.load %arg1[%c1] : memref<2xf32, #tpu.memory_space<smem>>
    %9 = vector.extract_strided_slice %0 {offsets = [1, 0], sizes = [1, 128], strides = [1, 1]} : vector<2x128xf32> to vector<1x128xf32>
    %10 = vector.broadcast %8 : f32 to vector<1x128xf32>
    %11 = arith.mulf %10, %9 : vector<1x128xf32>
    %12 = arith.addf %7, %11 : vector<1x128xf32>
    %cst = arith.constant 0.000000e+00 : f32
    %13 = vector.broadcast %cst : f32 to vector<1x128xf32>
    %14 = arith.maximumf %12, %13 : vector<1x128xf32>
    %c0_3 = arith.constant 0 : index
    %c0_4 = arith.constant 0 : index
    %15 = vector.load %arg4[%c0_3, %c0_4] : memref<1x128xf32, #tpu.memory_space<vmem>>, vector<1x128xf32>
    tpu.vector_store %arg4[%c0_3, %c0_4], %14 {strides = array<i32>} : memref<1x128xf32, #tpu.memory_space<vmem>>, vector<1x128xf32>,
    return
  }
  func.func @transform_0(%arg0: i32) -> i32 {
    %c0_i32 = arith.constant 0 : i32
    %c0_i32_0 = arith.constant 0 : i32
    return %c0_i32 : i32
  }
  func.func @transform_1(%arg0: i32) -> i32 {
    %c0_i32 = arith.constant 0 : i32
    %c0_i32_0 = arith.constant 0 : i32
    return %c0_i32 : i32
  }
  func.func @transform_2(%arg0: i32) -> (i32, i32) {
    %c0_i32 = arith.constant 0 : i32
    %c0_i32_0 = arith.constant 0 : i32
    return %c0_i32, %arg0 : i32, i32
  }
  func.func @transform_3(%arg0: i32) -> (i32, i32) {
    %c0_i32 = arith.constant 0 : i32
    %c0_i32_0 = arith.constant 0 : i32
    return %c0_i32, %arg0 : i32, i32
  }
}

</mosaic_0001>

<llo_original>
// kernel: tpu_custom_call.1
$region0: #{tpu_custom_call.1}
  #allocation0 [shape = 'u32[]', space=smem, size = 0x4, offset = 0x4, fixed_abs, tag = 'smem constant byte address 0x4 - core index']
  #allocation1 [shape = 'u32[144,128]{1,0:T(1,128)}', space=vmem, size = 0x12000, scoped, tag = 'internal scratch']
  #allocation2 [shape = 'f32[1]{0:T(128)S(6)}', space=smem, size = 0x200, scoped, tag = 'scoped memory for tpu_custom_call.1']
  %s0 = inlined_call_operand.vmem [shape: f32[2], index: 0, kind: input, shape index: {}]
  %s1 = inlined_call_operand.<no memory space> [shape: f32[1], index: 1, kind: input, shape index: {}]
  %s2 = inlined_call_operand.vmem [shape: f32[2,128], index: 2, kind: input, shape index: {}]
  %s3 = inlined_call_operand.hbm [shape: f32[1,128], index: 3, kind: output, shape index: {}]
  %s4 = sld [smem:[#allocation0]]
  $region26: #{tpu_custom_call.1} parent=0
    _
  %s6 = ssub.s32 1, %s4
  %s7 = scalar_select 0, %s6, %s4
  %8 = sst [smem:[#allocation2]] %s1
  $region1: #{tpu_custom_call.1} parent=0
    #allocation3 [shape = 'u8[512]{0}', space=smem, size = 0x200, scoped, tag = 'input window, operand 0, single buffered']
    #allocation4 [shape = 's32[1]{0}', space=sflag, size = 0x4, scoped, tag = 'scoped memory for tpu_custom_call.1']
    #allocation5 [shape = 's32[1]{0}', space=sflag, size = 0x4, scoped, tag = 'scoped memory for tpu_custom_call.1']
    #allocation6 [shape = 'u8[512]{0}', space=vmem, size = 0x400, scoped, tag = 'output window, operand 0, single buffered']
    %9 = vsyncpa [#allocation5], 0
    %10 = vsyncpa [#allocation4], 0
    // Predicated region
    $region2: #{tpu_custom_call.1} parent=1 // pred_check
      _
    $region3: #{tpu_custom_call.1} parent=1 // pred_check_branch
      %12 = sbr.rel (0) target = $region5
    $region4: #{tpu_custom_call.1} parent=1 // pred_region
      %s14 = ssub.s32 16, 16
      %15 = vsyncadd [#allocation5], %s14
      %s17 = sshll.u32 %s0, 4
      %s18 = int_to_ptr.vmem [resolvable:$true] %s17
      %20 = dma.vmem_to_smem %s18, 16, [#allocation3], [#allocation5]
    $region5: #{tpu_custom_call.1} parent=1 // pred_fallthru
      _
    // Predicated region
    $region6: #{tpu_custom_call.1} parent=1 // pred_check
      _
    $region7: #{tpu_custom_call.1} parent=1 // pred_check_branch
      %22 = sbr.rel (0) target = $region9
    $region8: #{tpu_custom_call.1} parent=1 // pred_region
      _
    $region9: #{tpu_custom_call.1} parent=1 // pred_fallthru
      _
    // Predicated region
    $region10: #{tpu_custom_call.1} parent=1 // pred_check
      _
    $region11: #{tpu_custom_call.1} parent=1 // pred_check_branch
      %24 = sbr.rel (0) target = $region13
    $region12: #{tpu_custom_call.1} parent=1 // pred_region
      _
    $region13: #{tpu_custom_call.1} parent=1 // pred_fallthru
      _
    // Predicated region
    $region14: #{tpu_custom_call.1} parent=1 // pred_check
      _
    $region15: #{tpu_custom_call.1} parent=1 // pred_check_branch
      %26 = sbr.rel (0) target = $region17
    $region16: #{tpu_custom_call.1} parent=1 // pred_region
      %27 = dma.done [#allocation5], 16
    $region17: #{tpu_custom_call.1} parent=1 // pred_fallthru
      _
    %28 = sfence
    %v29 = vld [vmem:[%s2] sm:$0x3]
    %s30 = sld [smem:[#allocation2]]
    %v31 = vstv %s30
    %s32 = sld [smem:[#allocation3]]
    %v33 = vstv %s32
    %v34 = vmul.f32 %v33, %v29
    %v35 = vadd.f32 %v31, %v34
    %s36 = sld [smem:[#allocation3 + $0x1]]
    %v37 = vstv %s36
    %v38 = vmul.f32 %v37, %v29
    %v40 = vrot.slane %v38, 1
    %v42 = vadd.f32 %v35, %v40
    %v43 = vmax.f32 %v42, 0.0
    %44 = vst [vmem:[#allocation6] sm:$0x1] %v43
    // Predicated region
    $region18: #{tpu_custom_call.1} parent=1 // pred_check
      _
    $region19: #{tpu_custom_call.1} parent=1 // pred_check_branch
      %46 = sbr.rel (0) target = $region21
    $region20: #{tpu_custom_call.1} parent=1 // pred_region
      %s48 = ssub.s32 16, 16
      %49 = vsyncadd [#allocation4], %s48
      %s51 = sshll.u32 [#allocation6], 4
      %s52 = int_to_ptr.vmem [resolvable:$true] %s51
      %54 = dma.vmem_to_hbm [thread:$0]  %s52, 16, %s3, [#allocation4]
    $region21: #{tpu_custom_call.1} parent=1 // pred_fallthru
      _
    // Predicated region
    $region22: #{tpu_custom_call.1} parent=1 // pred_check
      _
    $region23: #{tpu_custom_call.1} parent=1 // pred_check_branch
      %56 = sbr.rel (0) target = $region25
    $region24: #{tpu_custom_call.1} parent=1 // pred_region
      %57 = dma.done [#allocation4], 16
    $region25: #{tpu_custom_call.1} parent=1 // pred_fallthru
      _
    %58 = vsyncpa [#allocation4], 1
    %59 = vsyncpa [#allocation5], 1

</llo_original>
